<compile_context>
chip_gen: v7x
topology: tpu7x:2x2x1
jax: 0.10.0
libtpu: 0.0.40
codegen_flags: <defaults>
</compile_context>

<pallas_src>
import math
from functools import partial

import jax
import jax.numpy as jnp
from jax.experimental import pallas as pl
from jax.experimental.pallas import tpu as pltpu

LANE = 128
_TM = 256                       # destination-row tile (multiple of 128)
_TK = 256                       # source-node (reduction) tile
_VMEM_LIMIT = 32 * 1024 * 1024  # safe on v5e/v6e/v7x; tiles are far smaller
_FUSED_VMEM_BUDGET = 6 * 1024 * 1024  # fused path only when comfortably resident


def _round_up(x, m):
    return ((x + m - 1) // m) * m


def _pad2(x, rows, cols):
    out = jnp.zeros((rows, cols), x.dtype)
    return out.at[: x.shape[0], : x.shape[1]].set(x)


def _fold_norm(adj, norm):
    # A_hat[i, j] = norm[i] * A[i, j] * norm[j]
    return ((norm * adj) * norm.T).astype(jnp.float32)


# --------------------------------------------------------------------------
# Kernels
# --------------------------------------------------------------------------
def _fused_gcn_kernel(*refs, num_layers, compute_dtype):
    """All layers in one kernel; A_hat, h, and all W are VMEM-resident."""
    a_ref, h_ref = refs[0], refs[1]
    w_refs = refs[2:2 + num_layers]
    out_ref = refs[2 + num_layers]

    a = a_ref[...]
    h = h_ref[...]
    for li in range(num_layers):
        z = jnp.dot(h, w_refs[li][...], preferred_element_type=jnp.float32)
        y = jnp.dot(a, z.astype(compute_dtype),
                    preferred_element_type=jnp.float32)
        if li < num_layers - 1:                 # last GCNConv has activation=None
            h = jnp.maximum(y, 0.0).astype(compute_dtype)
        else:
            h = y
    out_ref[...] = h.astype(out_ref.dtype)


def _transform_kernel(h_ref, w_ref, z_ref):
    """z_tile = h_tile @ W  (feature transform, hoisted out of aggregation)."""
    z_ref[...] = jnp.dot(h_ref[...], w_ref[...],
                         preferred_element_type=jnp.float32).astype(z_ref.dtype)


def _aggregate_kernel(a_ref, z_ref, o_ref, acc_ref, *, apply_relu):
    """out_tile = A_hat[rows, :] @ z  with f32 accumulation over src tiles."""
    k = pl.program_id(1)

    @pl.when(k == 0)
    def _():
        acc_ref[...] = jnp.zeros_like(acc_ref)

    acc_ref[...] += jnp.dot(a_ref[...], z_ref[...],
                            preferred_element_type=jnp.float32)

    @pl.when(k == pl.num_programs(1) - 1)
    def _():
        y = acc_ref[...]
        if apply_relu:
            y = jnp.maximum(y, 0.0)
        o_ref[...] = y.astype(o_ref.dtype)


# --------------------------------------------------------------------------
# pallas_call wrappers
# --------------------------------------------------------------------------
def _fused_forward(a_p, h_p, w_ps, compute_dtype):
    n_pad = a_p.shape[0]
    f_last = w_ps[-1].shape[1]
    num_layers = len(w_ps)
    itemsize = a_p.dtype.itemsize

    flops = 0
    f_in = h_p.shape[1]
    for w in w_ps:
        flops += 2 * n_pad * f_in * w.shape[1] + 2 * n_pad * n_pad * w.shape[1]
        f_in = w.shape[1]
    bytes_accessed = int(a_p.size * itemsize + h_p.size * itemsize
                         + sum(w.size * itemsize for w in w_ps)
                         + n_pad * f_last * 4)

    in_specs = [pl.BlockSpec(a_p.shape, lambda i: (0, 0)),
                pl.BlockSpec(h_p.shape, lambda i: (0, 0))]
    in_specs += [pl.BlockSpec(w.shape, lambda i: (0, 0)) for w in w_ps]

    kernel = partial(_fused_gcn_kernel, num_layers=num_layers,
                     compute_dtype=compute_dtype)
    return pl.pallas_call(
        kernel,
        out_shape=jax.ShapeDtypeStruct((n_pad, f_last), jnp.float32),
        grid=(1,),  # whole (tiny) problem is VMEM resident; nothing to pipeline
        in_specs=in_specs,
        out_specs=pl.BlockSpec((n_pad, f_last), lambda i: (0, 0)),
        compiler_params=pltpu.CompilerParams(
            dimension_semantics=("arbitrary",),
            vmem_limit_bytes=_VMEM_LIMIT),
        cost_estimate=pl.CostEstimate(flops=int(flops), transcendentals=0,
                                      bytes_accessed=bytes_accessed),
    )(a_p, h_p, *w_ps)


def _transform(h, w, out_dtype):
    n_pad, f_in = h.shape
    f_out = w.shape[1]
    bytes_accessed = int(h.size * h.dtype.itemsize + w.size * w.dtype.itemsize
                         + n_pad * f_out * jnp.dtype(out_dtype).itemsize)
    return pl.pallas_call(
        _transform_kernel,
        out_shape=jax.ShapeDtypeStruct((n_pad, f_out), out_dtype),
        grid=(n_pad // _TM,),
        in_specs=[pl.BlockSpec((_TM, f_in), lambda i: (i, 0)),
                  pl.BlockSpec((f_in, f_out), lambda i: (0, 0))],
        out_specs=pl.BlockSpec((_TM, f_out), lambda i: (i, 0)),
        compiler_params=pltpu.CompilerParams(
            dimension_semantics=("parallel",),
            vmem_limit_bytes=_VMEM_LIMIT),
        cost_estimate=pl.CostEstimate(flops=2 * n_pad * f_in * f_out,
                                      transcendentals=0,
                                      bytes_accessed=bytes_accessed),
    )(h, w)


def _aggregate(a_p, z, *, apply_relu, out_dtype):
    n_pad = a_p.shape[0]
    f_out = z.shape[1]
    bytes_accessed = int(a_p.size * a_p.dtype.itemsize
                         + z.size * z.dtype.itemsize
                         + n_pad * f_out * jnp.dtype(out_dtype).itemsize)
    kernel = partial(_aggregate_kernel, apply_relu=apply_relu)
    return pl.pallas_call(
        kernel,
        out_shape=jax.ShapeDtypeStruct((n_pad, f_out), out_dtype),
        grid=(n_pad // _TM, n_pad // _TK),
        in_specs=[pl.BlockSpec((_TM, _TK), lambda i, k: (i, k)),
                  pl.BlockSpec((_TK, f_out), lambda i, k: (k, 0))],
        out_specs=pl.BlockSpec((_TM, f_out), lambda i, k: (i, 0)),
        scratch_shapes=[pltpu.VMEM((_TM, f_out), jnp.float32)],
        compiler_params=pltpu.CompilerParams(
            dimension_semantics=("parallel", "arbitrary"),
            vmem_limit_bytes=_VMEM_LIMIT),
        cost_estimate=pl.CostEstimate(flops=2 * n_pad * n_pad * f_out,
                                      transcendentals=0,
                                      bytes_accessed=bytes_accessed),
    )(a_p, z)


# --------------------------------------------------------------------------
# Forward pass
# --------------------------------------------------------------------------
def gcn_forward(features, weights, norm, adj,
                compute_dtype=jnp.bfloat16, force_tiled=False):
    """GCN_pyg forward: relu on every layer except the last (activation=None)."""
    n = features.shape[0]
    n_classes = weights[-1].shape[1]
    cd = jnp.dtype(compute_dtype)

    # Fold norm into the adjacency once (removes the [N,1] lane-width-1 input
    # and two full-tile broadcast multiplies per layer).
    a_hat = _fold_norm(adj, norm)

    # Lane-dense padded feature dims (multiples of 128); slice logits outside.
    f_dims = [features.shape[1]] + [w.shape[1] for w in weights]
    f_pads = [_round_up(d, LANE) for d in f_dims]

    # Path selection: fused single kernel only when everything is tiny.
    n_small = _round_up(n, 16)
    fused_bytes = (n_small * n_small * cd.itemsize
                   + n_small * f_pads[0] * cd.itemsize
                   + sum(f_pads[i] * f_pads[i + 1] * cd.itemsize
                         for i in range(len(weights)))
                   + 3 * n_small * max(f_pads) * 4)
    use_fused = (not force_tiled) and fused_bytes <= _FUSED_VMEM_BUDGET

    n_pad = n_small if use_fused else _round_up(n, max(_TM, _TK))

    a_p = _pad2(a_hat, n_pad, n_pad).astype(compute_dtype)
    h_p = _pad2(features.astype(jnp.float32), n_pad, f_pads[0]).astype(compute_dtype)
    w_ps = [_pad2(w.astype(jnp.float32), f_pads[i], f_pads[i + 1]).astype(compute_dtype)
            for i, w in enumerate(weights)]

    if use_fused:
        out = _fused_forward(a_p, h_p, w_ps, compute_dtype)
    else:
        h = h_p
        for li, w_p in enumerate(w_ps):
            last = li == len(w_ps) - 1
            z = _transform(h, w_p, out_dtype=compute_dtype)      # z = h @ W (once)
            h = _aggregate(a_p, z, apply_relu=not last,
                           out_dtype=jnp.float32 if last else compute_dtype)
        out = h
    return out[:n, :n_classes]


def gcn_reference(features, weights, norm, adj, compute_dtype=jnp.bfloat16):
    """Pure-JAX reference using the same bf16 rounding of inputs/intermediates."""
    cd = compute_dtype
    a = _fold_norm(adj, norm).astype(cd).astype(jnp.float32)
    h = features.astype(cd).astype(jnp.float32)
    ws = [w.astype(cd).astype(jnp.float32) for w in weights]
    for li, w in enumerate(ws):
        z = (h @ w).astype(cd).astype(jnp.float32)
        y = a @ z
        if li < len(ws) - 1:
            h = jnp.maximum(y, 0.0).astype(cd).astype(jnp.float32)
        else:
            h = y
    return h


# --------------------------------------------------------------------------
# Setup helpers + demo
# --------------------------------------------------------------------------
def init_weights(key, in_feats, n_hidden, n_classes, n_layers):
    # GCN_pyg builds n_layers + 1 GCNConv layers:
    # [in->hidden] + (n_layers-1)*[hidden->hidden] + [hidden->classes]
    dims = [in_feats] + [n_hidden] * n_layers + [n_classes]
    weights = []
    for i in range(len(dims) - 1):
        key, sub = jax.random.split(key)
        stdv = 1.0 / math.sqrt(dims[i + 1])  # matches reset_parameters()
        w = jax.random.uniform(sub, (dims[i], dims[i + 1]),
                               minval=-stdv, maxval=stdv, dtype=jnp.float32)
        weights.append(w)
    return weights


def make_graph(key, n, e):
    edge_index = jax.random.randint(key, (2, e), 0, n, dtype=jnp.int32)
    src, dst = edge_index[0], edge_index[1]
    # Dense adjacency equivalent of MessagePassing(aggr='add'):
    # A[dst, src] = edge multiplicity; propagate(edge_index, x) == A @ x.
    # TODO(synk): for very large sparse graphs a scalar-prefetched block-CSR
    # gather kernel would replace this dense materialization.
    adj = jnp.zeros((n, n), jnp.float32).at[dst, src].add(1.0)
    deg = adj.sum(axis=1)
    norm = (1.0 / jnp.sqrt(deg + 1.0)).reshape(n, 1).astype(jnp.float32)
    return adj, norm


if __name__ == "__main__":
    # ---- case 1: tiny graph -> fused single-kernel path --------------------
    n, e, in_feats, n_hidden, n_classes, n_layers = 64, 256, 16, 32, 8, 1
    k1, k2, k3 = jax.random.split(jax.random.PRNGKey(0), 3)
    adj, norm = make_graph(k1, n, e)
    features = jax.random.normal(k2, (n, in_feats), dtype=jnp.float32)
    weights = init_weights(k3, in_feats, n_hidden, n_classes, n_layers)

    out = jax.block_until_ready(gcn_forward(features, weights, norm, adj))
    ref = gcn_reference(features, weights, norm, adj)
    assert out.shape == (n, n_classes)
    assert jnp.allclose(out, ref, atol=5e-2, rtol=5e-2), "fused path mismatch"

    # ---- case 2: larger graph -> row/src tiled multi-kernel path -----------
    n, e, in_feats, n_hidden, n_classes, n_layers = 600, 4000, 100, 64, 10, 2
    k1, k2, k3 = jax.random.split(jax.random.PRNGKey(1), 3)
    adj, norm = make_graph(k1, n, e)
    features = jax.random.normal(k2, (n, in_feats), dtype=jnp.float32)
    weights = init_weights(k3, in_feats, n_hidden, n_classes, n_layers)

    out = jax.block_until_ready(
        gcn_forward(features, weights, norm, adj, force_tiled=True))
    ref = gcn_reference(features, weights, norm, adj)
    assert out.shape == (n, n_classes)
    assert jnp.allclose(out, ref, atol=5e-2, rtol=5e-2), "tiled path mismatch"

    print("KERNEL_OK")
</pallas_src>

<mosaic_0001>
module attributes {stable_mosaic.version = 11 : i64} {
  func.func @_fused_gcn_kernel(%arg0: i32, %arg1: memref<64x64xbf16, #tpu.memory_space<vmem>>, %arg2: memref<64x128xbf16, #tpu.memory_space<vmem>>, %arg3: memref<128x128xbf16, #tpu.memory_space<vmem>>, %arg4: memref<128x128xbf16, #tpu.memory_space<vmem>>, %arg5: memref<64x128xf32, #tpu.memory_space<vmem>>) attributes {dimension_semantics = [#tpu.dimension_semantics<arbitrary>], iteration_bounds = array<i64: 1>, scalar_prefetch = 0 : i64, scratch_operands = 0 : i64, tpu.core_type = #tpu.core_type<tc>, window_params = [{pipeline_mode = #tpu.pipeline_mode<synchronous>, transform_indices = @transform_0, window_bounds = array<i64: 64, 64>}, {pipeline_mode = #tpu.pipeline_mode<synchronous>, transform_indices = @transform_1, window_bounds = array<i64: 64, 128>}, {pipeline_mode = #tpu.pipeline_mode<synchronous>, transform_indices = @transform_2, window_bounds = array<i64: 128, 128>}, {pipeline_mode = #tpu.pipeline_mode<synchronous>, transform_indices = @transform_3, window_bounds = array<i64: 128, 128>}, {pipeline_mode = #tpu.pipeline_mode<synchronous>, transform_indices = @transform_4, window_bounds = array<i64: 64, 128>}]} {
    %c0 = arith.constant 0 : index
    %c0_0 = arith.constant 0 : index
    %0 = vector.load %arg1[%c0, %c0_0] : memref<64x64xbf16, #tpu.memory_space<vmem>>, vector<64x64xbf16>
    %c0_1 = arith.constant 0 : index
    %c0_2 = arith.constant 0 : index
    %1 = vector.load %arg2[%c0_1, %c0_2] : memref<64x128xbf16, #tpu.memory_space<vmem>>, vector<64x128xbf16>
    %c0_3 = arith.constant 0 : index
    %c0_4 = arith.constant 0 : index
    %2 = vector.load %arg3[%c0_3, %c0_4] : memref<128x128xbf16, #tpu.memory_space<vmem>>, vector<128x128xbf16>
    %cst = arith.constant dense<0.000000e+00> : vector<64x128xf32>
    %3 = tpu.matmul %1, %2, %cst {dimension_numbers = #tpu.dot_dimension_numbers<[1], [0], [0], [1], [0, 0, 1, 1], [], []>} : vector<64x128xbf16>, vector<128x128xbf16>, vector<64x128xf32> -> vector<64x128xf32>
    %4 = arith.truncf %3 : vector<64x128xf32> to vector<64x128xbf16>
    %cst_5 = arith.constant dense<0.000000e+00> : vector<64x128xf32>
    %5 = tpu.matmul %0, %4, %cst_5 {dimension_numbers = #tpu.dot_dimension_numbers<[1], [0], [0], [1], [0, 0, 1, 1], [], []>} : vector<64x64xbf16>, vector<64x128xbf16>, vector<64x128xf32> -> vector<64x128xf32>
    %cst_6 = arith.constant 0.000000e+00 : f32
    %6 = vector.broadcast %cst_6 : f32 to vector<64x128xf32>
    %7 = arith.maximumf %5, %6 : vector<64x128xf32>
    %8 = arith.truncf %7 : vector<64x128xf32> to vector<64x128xbf16>
    %c0_7 = arith.constant 0 : index
    %c0_8 = arith.constant 0 : index
    %9 = vector.load %arg4[%c0_7, %c0_8] : memref<128x128xbf16, #tpu.memory_space<vmem>>, vector<128x128xbf16>
    %cst_9 = arith.constant dense<0.000000e+00> : vector<64x128xf32>
    %10 = tpu.matmul %8, %9, %cst_9 {dimension_numbers = #tpu.dot_dimension_numbers<[1], [0], [0], [1], [0, 0, 1, 1], [], []>} : vector<64x128xbf16>, vector<128x128xbf16>, vector<64x128xf32> -> vector<64x128xf32>
    %11 = arith.truncf %10 : vector<64x128xf32> to vector<64x128xbf16>
    %cst_10 = arith.constant dense<0.000000e+00> : vector<64x128xf32>
    %12 = tpu.matmul %0, %11, %cst_10 {dimension_numbers = #tpu.dot_dimension_numbers<[1], [0], [0], [1], [0, 0, 1, 1], [], []>} : vector<64x64xbf16>, vector<64x128xbf16>, vector<64x128xf32> -> vector<64x128xf32>
    %c0_11 = arith.constant 0 : index
    %c0_12 = arith.constant 0 : index
    %13 = vector.load %arg5[%c0_11, %c0_12] : memref<64x128xf32, #tpu.memory_space<vmem>>, vector<64x128xf32>
    tpu.vector_store %arg5[%c0_11, %c0_12], %12 {strides = array<i32>} : memref<64x128xf32, #tpu.memory_space<vmem>>, vector<64x128xf32>,
    return
  }
  func.func @transform_0(%arg0: i32) -> (i32, i32) {
    %c0_i32 = arith.constant 0 : i32
    %c0_i32_0 = arith.constant 0 : i32
    %c0_i32_1 = arith.constant 0 : i32
    return %c0_i32, %c0_i32_0 : i32, i32
  }
  func.func @transform_1(%arg0: i32) -> (i32, i32) {
    %c0_i32 = arith.constant 0 : i32
    %c0_i32_0 = arith.constant 0 : i32
    %c0_i32_1 = arith.constant 0 : i32
    return %c0_i32, %c0_i32_0 : i32, i32
  }
  func.func @transform_2(%arg0: i32) -> (i32, i32) {
    %c0_i32 = arith.constant 0 : i32
    %c0_i32_0 = arith.constant 0 : i32
    %c0_i32_1 = arith.constant 0 : i32
    return %c0_i32, %c0_i32_0 : i32, i32
  }
  func.func @transform_3(%arg0: i32) -> (i32, i32) {
    %c0_i32 = arith.constant 0 : i32
    %c0_i32_0 = arith.constant 0 : i32
    %c0_i32_1 = arith.constant 0 : i32
    return %c0_i32, %c0_i32_0 : i32, i32
  }
  func.func @transform_4(%arg0: i32) -> (i32, i32) {
    %c0_i32 = arith.constant 0 : i32
    %c0_i32_0 = arith.constant 0 : i32
    %c0_i32_1 = arith.constant 0 : i32
    return %c0_i32, %c0_i32_0 : i32, i32
  }
}

</mosaic_0001>

<llo_original>
// kernel: tpu_custom_call.1
$region0: #{tpu_custom_call.1}
  #allocation0 [shape = 'u32[]', space=smem, size = 0x4, offset = 0x4, fixed_abs, tag = 'smem constant byte address 0x4 - core index']
  #allocation1 [shape = 'u32[144,128]{1,0:T(1,128)}', space=vmem, size = 0x12000, scoped, tag = 'internal scratch']
  %s0 = inlined_call_operand.hbm [shape: bf16[64,64], index: 0, kind: input, shape index: {}]
  %s1 = inlined_call_operand.hbm [shape: bf16[64,128], index: 1, kind: input, shape index: {}]
  %s2 = inlined_call_operand.hbm [shape: bf16[128,128], index: 2, kind: input, shape index: {}]
  %s3 = inlined_call_operand.hbm [shape: bf16[128,128], index: 3, kind: input, shape index: {}]
  %s4 = inlined_call_operand.hbm [shape: f32[64,128], index: 4, kind: output, shape index: {}]
  %s5 = sld [smem:[#allocation0]]
  $region42: #{tpu_custom_call.1} parent=0
    _
  %s7 = ssub.s32 1, %s5
  %s8 = scalar_select 0, %s7, %s5
  $region1: #{tpu_custom_call.1} parent=0
    #allocation2 [shape = 'u8[16384]{0}', space=vmem, size = 0x4000, scoped, tag = 'input window, operand 0, single buffered']
    #allocation3 [shape = 's32[1]{0}', space=sflag, size = 0x4, scoped, tag = 'scoped memory for tpu_custom_call.1']
    #allocation4 [shape = 's32[1]{0}', space=sflag, size = 0x4, scoped, tag = 'scoped memory for tpu_custom_call.1']
    #allocation5 [shape = 'u8[16384]{0}', space=vmem, size = 0x4000, scoped, tag = 'input window, operand 1, single buffered']
    #allocation6 [shape = 's32[1]{0}', space=sflag, size = 0x4, scoped, tag = 'scoped memory for tpu_custom_call.1']
    #allocation7 [shape = 'u8[32768]{0}', space=vmem, size = 0x8000, scoped, tag = 'input window, operand 2, single buffered']
    #allocation8 [shape = 'u8[32768]{0}', space=vmem, size = 0x8000, scoped, tag = 'input window, operand 3, single buffered']
    #allocation9 [shape = 's32[1]{0}', space=sflag, size = 0x4, scoped, tag = 'scoped memory for tpu_custom_call.1']
    #allocation10 [shape = 'u8[32768]{0}', space=vmem, size = 0x8000, scoped, tag = 'output window, operand 0, single buffered']
    %9 = vsyncpa [#allocation3], 0
    %10 = vsyncpa [#allocation6], 0
    %11 = vsyncpa [#allocation9], 0
    %12 = vsyncpa [#allocation4], 0
    // Predicated region
    $region2: #{tpu_custom_call.1} parent=1 // pred_check
      _
    $region3: #{tpu_custom_call.1} parent=1 // pred_check_branch
      %14 = sbr.rel (0) target = $region5
    $region4: #{tpu_custom_call.1} parent=1 // pred_region
      %s16 = ssub.s32 512, 512
      %17 = vsyncadd [#allocation3], %s16
      %s18 = sshll.u32 [#allocation2], 4
      %s19 = int_to_ptr.vmem [resolvable:$true] %s18
      %24 = dma.hbm_to_vmem [thread:$0]  %s0, 512, %s19, [#allocation3], 64, 64, 4
    $region5: #{tpu_custom_call.1} parent=1 // pred_fallthru
      _
    // Predicated region
    $region6: #{tpu_custom_call.1} parent=1 // pred_check
      _
    $region7: #{tpu_custom_call.1} parent=1 // pred_check_branch
      %26 = sbr.rel (0) target = $region9
    $region8: #{tpu_custom_call.1} parent=1 // pred_region
      %s28 = ssub.s32 512, 512
      %29 = vsyncadd [#allocation6], %s28
      %s30 = sshll.u32 [#allocation5], 4
      %s31 = int_to_ptr.vmem [resolvable:$true] %s30
      %36 = dma.hbm_to_vmem [thread:$0]  %s1, 512, %s31, [#allocation6], 64, 64, 4
    $region9: #{tpu_custom_call.1} parent=1 // pred_fallthru
      _
    // Predicated region
    $region10: #{tpu_custom_call.1} parent=1 // pred_check
      _
    $region11: #{tpu_custom_call.1} parent=1 // pred_check_branch
      %38 = sbr.rel (0) target = $region13
    $region12: #{tpu_custom_call.1} parent=1 // pred_region
      %s40 = ssub.s32 1024, 1024
      %41 = vsyncadd [#allocation6], %s40
      %s42 = sshll.u32 [#allocation7], 4
      %s43 = int_to_ptr.vmem [resolvable:$true] %s42
      %48 = dma.hbm_to_vmem [thread:$0]  %s2, 1024, %s43, [#allocation6], 64, 64, 4
    $region13: #{tpu_custom_call.1} parent=1 // pred_fallthru
      _
    // Predicated region
    $region14: #{tpu_custom_call.1} parent=1 // pred_check
      _
    $region15: #{tpu_custom_call.1} parent=1 // pred_check_branch
      %50 = sbr.rel (0) target = $region17
    $region16: #{tpu_custom_call.1} parent=1 // pred_region
      %s52 = ssub.s32 1024, 1024
      %53 = vsyncadd [#allocation9], %s52
      %s54 = sshll.u32 [#allocation8], 4
      %s55 = int_to_ptr.vmem [resolvable:$true] %s54
      %60 = dma.hbm_to_vmem [thread:$0]  %s3, 1024, %s55, [#allocation9], 64, 64, 4
    $region17: #{tpu_custom_call.1} parent=1 // pred_fallthru
      _
    // Predicated region
    $region18: #{tpu_custom_call.1} parent=1 // pred_check
      _
    $region19: #{tpu_custom_call.1} parent=1 // pred_check_branch
      %62 = sbr.rel (0) target = $region21
    $region20: #{tpu_custom_call.1} parent=1 // pred_region
      %63 = dma.done [#allocation3], 512
    $region21: #{tpu_custom_call.1} parent=1 // pred_fallthru
      _
    // Predicated region
    $region22: #{tpu_custom_call.1} parent=1 // pred_check
      _
    $region23: #{tpu_custom_call.1} parent=1 // pred_check_branch
      %65 = sbr.rel (0) target = $region25
    $region24: #{tpu_custom_call.1} parent=1 // pred_region
      %66 = dma.done [#allocation6], 512
    $region25: #{tpu_custom_call.1} parent=1 // pred_fallthru
      _
    // Predicated region
    $region26: #{tpu_custom_call.1} parent=1 // pred_check
      _
    $region27: #{tpu_custom_call.1} parent=1 // pred_check_branch
      %68 = sbr.rel (0) target = $region29
    $region28: #{tpu_custom_call.1} parent=1 // pred_region
      %69 = dma.done [#allocation6], 1024
    $region29: #{tpu_custom_call.1} parent=1 // pred_fallthru
      _
    // Predicated region
    $region30: #{tpu_custom_call.1} parent=1 // pred_check
      _
    $region31: #{tpu_custom_call.1} parent=1 // pred_check_branch
      %71 = sbr.rel (0) target = $region33
    $region32: #{tpu_custom_call.1} parent=1 // pred_region
      %72 = dma.done [#allocation9], 1024
    $region33: #{tpu_custom_call.1} parent=1 // pred_fallthru
      _
    %v74 = vld [vmem:[#allocation2] sm:$0xf]
    %v75 = vld [vmem:[#allocation2 + $0x4] sm:$0xf]
    %v76 = vld [vmem:[#allocation2 + $0x8] sm:$0xf]
    %v77 = vld [vmem:[#allocation2 + $0xc] sm:$0xf]
    %v78 = vld [vmem:[#allocation2 + $0x10] sm:$0xf]
    %v79 = vld [vmem:[#allocation2 + $0x14] sm:$0xf]
    %v80 = vld [vmem:[#allocation2 + $0x18] sm:$0xf]
    %v81 = vld [vmem:[#allocation2 + $0x1c] sm:$0xf]
    %v82 = vld [vmem:[#allocation5] sm:$0xf]
    %v83 = vld [vmem:[#allocation5 + $0x4] sm:$0xf]
    %v84 = vld [vmem:[#allocation5 + $0x8] sm:$0xf]
    %v85 = vld [vmem:[#allocation5 + $0xc] sm:$0xf]
    %v86 = vld [vmem:[#allocation5 + $0x10] sm:$0xf]
    %v87 = vld [vmem:[#allocation5 + $0x14] sm:$0xf]
    %v88 = vld [vmem:[#allocation5 + $0x18] sm:$0xf]
    %v89 = vld [vmem:[#allocation5 + $0x1c] sm:$0xf]
    %v90 = vld [vmem:[#allocation7] sm:$0xf]
    %v91 = vld [vmem:[#allocation7 + $0x4] sm:$0xf]
    %v92 = vld [vmem:[#allocation7 + $0x8] sm:$0xf]
    %v93 = vld [vmem:[#allocation7 + $0xc] sm:$0xf]
    %v94 = vld [vmem:[#allocation7 + $0x10] sm:$0xf]
    %v95 = vld [vmem:[#allocation7 + $0x14] sm:$0xf]
    %v96 = vld [vmem:[#allocation7 + $0x18] sm:$0xf]
    %v97 = vld [vmem:[#allocation7 + $0x1c] sm:$0xf]
    %v98 = vld [vmem:[#allocation7 + $0x20] sm:$0xf]
    %v99 = vld [vmem:[#allocation7 + $0x24] sm:$0xf]
    %v100 = vld [vmem:[#allocation7 + $0x28] sm:$0xf]
    %v101 = vld [vmem:[#allocation7 + $0x2c] sm:$0xf]
    %v102 = vld [vmem:[#allocation7 + $0x30] sm:$0xf]
    %v103 = vld [vmem:[#allocation7 + $0x34] sm:$0xf]
    %v104 = vld [vmem:[#allocation7 + $0x38] sm:$0xf]
    %v105 = vld [vmem:[#allocation7 + $0x3c] sm:$0xf]
    %v114 = vunpack.c.l.b16 %v82
    %v115 = vunpack.c.l.b16 %v83
    %v116 = vunpack.c.l.b16 %v84
    %v117 = vunpack.c.l.b16 %v85
    %v118 = vunpack.c.l.b16 %v86
    %v119 = vunpack.c.l.b16 %v87
    %v120 = vunpack.c.l.b16 %v88
    %v121 = vunpack.c.l.b16 %v89
    %v122 = vpack.c.b16 %v115, %v114
    %v123 = vpack.c.b16 %v117, %v116
    %v124 = vpack.c.b16 %v119, %v118
    %v125 = vpack.c.b16 %v121, %v120
    %v146 = vunpack.c.l.b16 %v90
    %v147 = vunpack.c.l.b16 %v91
    %v148 = vunpack.c.l.b16 %v92
    %v149 = vunpack.c.l.b16 %v93
    %v150 = vunpack.c.l.b16 %v94
    %v151 = vunpack.c.l.b16 %v95
    %v152 = vunpack.c.l.b16 %v96
    %v153 = vunpack.c.l.b16 %v97
    %v154 = vunpack.c.l.b16 %v98
    %v155 = vunpack.c.l.b16 %v99
    %v156 = vunpack.c.l.b16 %v100
    %v157 = vunpack.c.l.b16 %v101
    %v158 = vunpack.c.l.b16 %v102
    %v159 = vunpack.c.l.b16 %v103
    %v160 = vunpack.c.l.b16 %v104
    %v161 = vunpack.c.l.b16 %v105
    %v162 = vpack.c.b16 %v147, %v146
    %v163 = vpack.c.b16 %v149, %v148
    %v164 = vpack.c.b16 %v151, %v150
    %v165 = vpack.c.b16 %v153, %v152
    %v166 = vpack.c.b16 %v155, %v154
    %v167 = vpack.c.b16 %v157, %v156
    %v168 = vpack.c.b16 %v159, %v158
    %v169 = vpack.c.b16 %v161, %v160
    %178 = vmatprep.subr.bf16.mxu0 0
    %179 = vmatpush1.bf16.msra.mxu0 %v162
    %180 = vmatprep.subr.bf16.mxu0 0
    %181 = vmatpush1.bf16.msra.mxu0 %v163
    %182 = vmatprep.subr.bf16.mxu0 0
    %183 = vmatpush1.bf16.msra.mxu0 %v164
    %184 = vmatprep.subr.bf16.mxu0 0
    %185 = vmatpush1.bf16.msra.mxu0 %v165
    %186 = vmatprep.subr.bf16.mxu0 0
    %187 = vmatpush1.bf16.msra.mxu0 %v166
    %188 = vmatprep.subr.bf16.mxu0 0
    %189 = vmatpush1.bf16.msra.mxu0 %v167
    %190 = vmatprep.subr.bf16.mxu0 0
    %191 = vmatpush1.bf16.msra.mxu0 %v168
    %192 = vmatprep.subr.bf16.mxu0 0
    %193 = vmatpush1.bf16.msra.mxu0 %v169
    %194 = vmatprep.subr.bf16.mxu0 0
    %195 = vmatpush1.bf16.msra.mxu0 0
    %196 = vmatprep.subr.bf16.mxu0 0
    %197 = vmatpush1.bf16.msra.mxu0 0
    %198 = vmatprep.subr.bf16.mxu0 0
    %199 = vmatpush1.bf16.msra.mxu0 0
    %200 = vmatprep.subr.bf16.mxu0 0
    %201 = vmatpush1.bf16.msra.mxu0 0
    %202 = vmatprep.subr.bf16.mxu0 0
    %203 = vmatpush1.bf16.msra.mxu0 0
    %204 = vmatprep.subr.bf16.mxu0 0
    %205 = vmatpush1.bf16.msra.mxu0 0
    %206 = vmatprep.subr.bf16.mxu0 0
    %207 = vmatpush1.bf16.msra.mxu0 0
    %208 = vmatprep.subr.bf16.mxu0 0
    %209 = vmatpush1.bf16.msra.mxu0 0
    %210 = vmatprep.mubr.bf16.mxu0 0
    %211 = vmatmul.mubr.bf16.gmra.mrb[0].mxu0 %v122
    %v212 = vpop.f32.mrb[0].mxu0
    %v213 = vadd.f32 0.0, %v212
    %v214 = vpop.f32.mrb[0].mxu0
    %v215 = vpop.f32.mrb[0].mxu0
    %v216 = vadd.f32 0.0, %v215
    %v217 = vpop.f32.mrb[0].mxu0
    %218 = vmatprep.mubr.bf16.mxu0 0
    %219 = vmatmul.mubr.bf16.gmra.mrb[0].mxu0 %v123
    %v220 = vpop.f32.mrb[0].mxu0
    %v221 = vadd.f32 0.0, %v220
    %v222 = vpop.f32.mrb[0].mxu0
    %v223 = vpop.f32.mrb[0].mxu0
    %v224 = vadd.f32 0.0, %v223
    %v225 = vpop.f32.mrb[0].mxu0
    %226 = vmatprep.mubr.bf16.mxu0 0
    %227 = vmatmul.mubr.bf16.gmra.mrb[0].mxu0 %v124
    %v228 = vpop.f32.mrb[0].mxu0
    %v229 = vadd.f32 0.0, %v228
    %v230 = vpop.f32.mrb[0].mxu0
    %v231 = vpop.f32.mrb[0].mxu0
    %v232 = vadd.f32 0.0, %v231
    %v233 = vpop.f32.mrb[0].mxu0
    %234 = vmatprep.mubr.bf16.mxu0 0
    %235 = vmatmul.mubr.bf16.gmra.mrb[0].mxu0 %v125
    %v236 = vpop.f32.mrb[0].mxu0
    %v237 = vadd.f32 0.0, %v236
    %v238 = vpop.f32.mrb[0].mxu0
    %v239 = vpop.f32.mrb[0].mxu0
    %v240 = vadd.f32 0.0, %v239
    %v241 = vpop.f32.mrb[0].mxu0
    %242 = vdwg.mxu0
    %v243 = vpack.c.bf16 %v216, %v213
    %v244 = vpack.c.bf16 %v224, %v221
    %v245 = vpack.c.bf16 %v232, %v229
    %v246 = vpack.c.bf16 %v240, %v237
    %v255 = vunpack.c.l.b16 %v74
    %v256 = vunpack.c.l.b16 %v75
    %v257 = vunpack.c.l.b16 %v76
    %v258 = vunpack.c.l.b16 %v77
    %v259 = vunpack.c.l.b16 %v78
    %v260 = vunpack.c.l.b16 %v79
    %v261 = vunpack.c.l.b16 %v80
    %v262 = vunpack.c.l.b16 %v81
    %v263 = vpack.c.b16 %v256, %v255
    %v264 = vpack.c.b16 %v258, %v257
    %v265 = vpack.c.b16 %v260, %v259
    %v266 = vpack.c.b16 %v262, %v261
    %vm267 = vcmask 523264
    %v269 = vsel %vm267, %v263, 0
    %v272 = vsel %vm267, %v264, 0
    %v275 = vsel %vm267, %v265, 0
    %v278 = vsel %vm267, %v266, 0
    %280 = vmatprep.subr.bf16.mxu0 0
    %281 = vmatpush1.bf16.msra.mxu0 %v243
    %282 = vmatprep.subr.bf16.mxu0 0
    %283 = vmatpush1.bf16.msra.mxu0 %v244
    %284 = vmatprep.subr.bf16.mxu0 0
    %285 = vmatpush1.bf16.msra.mxu0 %v245
    %286 = vmatprep.subr.bf16.mxu0 0
    %287 = vmatpush1.bf16.msra.mxu0 %v246
    %288 = vmatprep.subr.bf16.mxu0 0
    %289 = vmatpush1.bf16.msra.mxu0 0
    %290 = vmatprep.subr.bf16.mxu0 0
    %291 = vmatpush1.bf16.msra.mxu0 0
    %292 = vmatprep.subr.bf16.mxu0 0
    %293 = vmatpush1.bf16.msra.mxu0 0
    %294 = vmatprep.subr.bf16.mxu0 0
    %295 = vmatpush1.bf16.msra.mxu0 0
    %296 = vmatprep.subr.bf16.mxu0 0
    %297 = vmatpush1.bf16.msra.mxu0 0
    %298 = vmatprep.subr.bf16.mxu0 0
    %299 = vmatpush1.bf16.msra.mxu0 0
    %300 = vmatprep.subr.bf16.mxu0 0
    %301 = vmatpush1.bf16.msra.mxu0 0
    %302 = vmatprep.subr.bf16.mxu0 0
    %303 = vmatpush1.bf16.msra.mxu0 0
    %304 = vmatprep.subr.bf16.mxu0 0
    %305 = vmatpush1.bf16.msra.mxu0 0
    %306 = vmatprep.subr.bf16.mxu0 0
    %307 = vmatpush1.bf16.msra.mxu0 0
    %308 = vmatprep.subr.bf16.mxu0 0
    %309 = vmatpush1.bf16.msra.mxu0 0
    %310 = vmatprep.subr.bf16.mxu0 0
    %311 = vmatpush1.bf16.msra.mxu0 0
    %312 = vmatprep.mubr.bf16.mxu0 0
    %313 = vmatmul.mubr.bf16.gmra.mrb[0].mxu0 %v269
    %v314 = vpop.f32.mrb[0].mxu0
    %v315 = vadd.f32 0.0, %v314
    %v316 = vpop.f32.mrb[0].mxu0
    %v317 = vpop.f32.mrb[0].mxu0
    %v318 = vadd.f32 0.0, %v317
    %v319 = vpop.f32.mrb[0].mxu0
    %320 = vmatprep.mubr.bf16.mxu0 0
    %321 = vmatmul.mubr.bf16.gmra.mrb[0].mxu0 %v272
    %v322 = vpop.f32.mrb[0].mxu0
    %v323 = vadd.f32 0.0, %v322
    %v324 = vpop.f32.mrb[0].mxu0
    %v325 = vpop.f32.mrb[0].mxu0
    %v326 = vadd.f32 0.0, %v325
    %v327 = vpop.f32.mrb[0].mxu0
    %328 = vmatprep.mubr.bf16.mxu0 0
    %329 = vmatmul.mubr.bf16.gmra.mrb[0].mxu0 %v275
    %v330 = vpop.f32.mrb[0].mxu0
    %v331 = vadd.f32 0.0, %v330
    %v332 = vpop.f32.mrb[0].mxu0
    %v333 = vpop.f32.mrb[0].mxu0
    %v334 = vadd.f32 0.0, %v333
    %v335 = vpop.f32.mrb[0].mxu0
    %336 = vmatprep.mubr.bf16.mxu0 0
    %337 = vmatmul.mubr.bf16.gmra.mrb[0].mxu0 %v278
    %v338 = vpop.f32.mrb[0].mxu0
    %v339 = vadd.f32 0.0, %v338
    %v340 = vpop.f32.mrb[0].mxu0
    %v341 = vpop.f32.mrb[0].mxu0
    %v342 = vadd.f32 0.0, %v341
    %v343 = vpop.f32.mrb[0].mxu0
    %344 = vdwg.mxu0
    %v345 = vmax.f32 %v315, 0.0
    %v346 = vmax.f32 %v318, 0.0
    %v347 = vmax.f32 %v323, 0.0
    %v348 = vmax.f32 %v326, 0.0
    %v349 = vmax.f32 %v331, 0.0
    %v350 = vmax.f32 %v334, 0.0
    %v351 = vmax.f32 %v339, 0.0
    %v352 = vmax.f32 %v342, 0.0
    %v353 = vpack.c.bf16 %v346, %v345
    %v354 = vpack.c.bf16 %v348, %v347
    %v355 = vpack.c.bf16 %v350, %v349
    %v356 = vpack.c.bf16 %v352, %v351
    %v357 = vld [vmem:[#allocation8] sm:$0xf]
    %v358 = vld [vmem:[#allocation8 + $0x4] sm:$0xf]
    %v359 = vld [vmem:[#allocation8 + $0x8] sm:$0xf]
    %v360 = vld [vmem:[#allocation8 + $0xc] sm:$0xf]
    %v361 = vld [vmem:[#allocation8 + $0x10] sm:$0xf]
    %v362 = vld [vmem:[#allocation8 + $0x14] sm:$0xf]
    %v363 = vld [vmem:[#allocation8 + $0x18] sm:$0xf]
    %v364 = vld [vmem:[#allocation8 + $0x1c] sm:$0xf]
    %v365 = vld [vmem:[#allocation8 + $0x20] sm:$0xf]
    %v366 = vld [vmem:[#allocation8 + $0x24] sm:$0xf]
    %v367 = vld [vmem:[#allocation8 + $0x28] sm:$0xf]
    %v368 = vld [vmem:[#allocation8 + $0x2c] sm:$0xf]
    %v369 = vld [vmem:[#allocation8 + $0x30] sm:$0xf]
    %v370 = vld [vmem:[#allocation8 + $0x34] sm:$0xf]
    %v371 = vld [vmem:[#allocation8 + $0x38] sm:$0xf]
    %v372 = vld [vmem:[#allocation8 + $0x3c] sm:$0xf]
    %v389 = vunpack.c.l.b16 %v357
    %v390 = vunpack.c.l.b16 %v358
    %v391 = vunpack.c.l.b16 %v359
    %v392 = vunpack.c.l.b16 %v360
    %v393 = vunpack.c.l.b16 %v361
    %v394 = vunpack.c.l.b16 %v362
    %v395 = vunpack.c.l.b16 %v363
    %v396 = vunpack.c.l.b16 %v364
    %v397 = vunpack.c.l.b16 %v365
    %v398 = vunpack.c.l.b16 %v366
    %v399 = vunpack.c.l.b16 %v367
    %v400 = vunpack.c.l.b16 %v368
    %v401 = vunpack.c.l.b16 %v369
    %v402 = vunpack.c.l.b16 %v370
    %v403 = vunpack.c.l.b16 %v371
    %v404 = vunpack.c.l.b16 %v372
    %v405 = vpack.c.b16 %v390, %v389
    %v406 = vpack.c.b16 %v392, %v391
    %v407 = vpack.c.b16 %v394, %v393
    %v408 = vpack.c.b16 %v396, %v395
    %v409 = vpack.c.b16 %v398, %v397
    %v410 = vpack.c.b16 %v400, %v399
    %v411 = vpack.c.b16 %v402, %v401
    %v412 = vpack.c.b16 %v404, %v403
    %421 = vmatprep.subr.bf16.mxu0 0
    %422 = vmatpush1.bf16.msra.mxu0 %v405
    %423 = vmatprep.subr.bf16.mxu0 0
    %424 = vmatpush1.bf16.msra.mxu0 %v406
    %425 = vmatprep.subr.bf16.mxu0 0
    %426 = vmatpush1.bf16.msra.mxu0 %v407
    %427 = vmatprep.subr.bf16.mxu0 0
    %428 = vmatpush1.bf16.msra.mxu0 %v408
    %429 = vmatprep.subr.bf16.mxu0 0
    %430 = vmatpush1.bf16.msra.mxu0 %v409
    %431 = vmatprep.subr.bf16.mxu0 0
    %432 = vmatpush1.bf16.msra.mxu0 %v410
    %433 = vmatprep.subr.bf16.mxu0 0
    %434 = vmatpush1.bf16.msra.mxu0 %v411
    %435 = vmatprep.subr.bf16.mxu0 0
    %436 = vmatpush1.bf16.msra.mxu0 %v412
    %437 = vmatprep.subr.bf16.mxu0 0
    %438 = vmatpush1.bf16.msra.mxu0 0
    %439 = vmatprep.subr.bf16.mxu0 0
    %440 = vmatpush1.bf16.msra.mxu0 0
    %441 = vmatprep.subr.bf16.mxu0 0
    %442 = vmatpush1.bf16.msra.mxu0 0
    %443 = vmatprep.subr.bf16.mxu0 0
    %444 = vmatpush1.bf16.msra.mxu0 0
    %445 = vmatprep.subr.bf16.mxu0 0
    %446 = vmatpush1.bf16.msra.mxu0 0
    %447 = vmatprep.subr.bf16.mxu0 0
    %448 = vmatpush1.bf16.msra.mxu0 0
    %449 = vmatprep.subr.bf16.mxu0 0
    %450 = vmatpush1.bf16.msra.mxu0 0
    %451 = vmatprep.subr.bf16.mxu0 0
    %452 = vmatpush1.bf16.msra.mxu0 0
    %453 = vmatprep.mubr.bf16.mxu0 0
    %454 = vmatmul.mubr.bf16.gmra.mrb[0].mxu0 %v353
    %v455 = vpop.f32.mrb[0].mxu0
    %v456 = vadd.f32 0.0, %v455
    %v457 = vpop.f32.mrb[0].mxu0
    %v458 = vpop.f32.mrb[0].mxu0
    %v459 = vadd.f32 0.0, %v458
    %v460 = vpop.f32.mrb[0].mxu0
    %461 = vmatprep.mubr.bf16.mxu0 0
    %462 = vmatmul.mubr.bf16.gmra.mrb[0].mxu0 %v354
    %v463 = vpop.f32.mrb[0].mxu0
    %v464 = vadd.f32 0.0, %v463
    %v465 = vpop.f32.mrb[0].mxu0
    %v466 = vpop.f32.mrb[0].mxu0
    %v467 = vadd.f32 0.0, %v466
    %v468 = vpop.f32.mrb[0].mxu0
    %469 = vmatprep.mubr.bf16.mxu0 0
    %470 = vmatmul.mubr.bf16.gmra.mrb[0].mxu0 %v355
    %v471 = vpop.f32.mrb[0].mxu0
    %v472 = vadd.f32 0.0, %v471
    %v473 = vpop.f32.mrb[0].mxu0
    %v474 = vpop.f32.mrb[0].mxu0
    %v475 = vadd.f32 0.0, %v474
    %v476 = vpop.f32.mrb[0].mxu0
    %477 = vmatprep.mubr.bf16.mxu0 0
    %478 = vmatmul.mubr.bf16.gmra.mrb[0].mxu0 %v356
    %v479 = vpop.f32.mrb[0].mxu0
    %v480 = vadd.f32 0.0, %v479
    %v481 = vpop.f32.mrb[0].mxu0
    %v482 = vpop.f32.mrb[0].mxu0
    %v483 = vadd.f32 0.0, %v482
    %v484 = vpop.f32.mrb[0].mxu0
    %485 = vdwg.mxu0
    %v486 = vpack.c.bf16 %v459, %v456
    %v487 = vpack.c.bf16 %v467, %v464
    %v488 = vpack.c.bf16 %v475, %v472
    %v489 = vpack.c.bf16 %v483, %v480
    %490 = vmatprep.subr.bf16.mxu0 0
    %491 = vmatpush1.bf16.msra.mxu0 %v486
    %492 = vmatprep.subr.bf16.mxu0 0
    %493 = vmatpush1.bf16.msra.mxu0 %v487
    %494 = vmatprep.subr.bf16.mxu0 0
    %495 = vmatpush1.bf16.msra.mxu0 %v488
    %496 = vmatprep.subr.bf16.mxu0 0
    %497 = vmatpush1.bf16.msra.mxu0 %v489
    %498 = vmatprep.subr.bf16.mxu0 0
    %499 = vmatpush1.bf16.msra.mxu0 0
    %500 = vmatprep.subr.bf16.mxu0 0
    %501 = vmatpush1.bf16.msra.mxu0 0
    %502 = vmatprep.subr.bf16.mxu0 0
    %503 = vmatpush1.bf16.msra.mxu0 0
    %504 = vmatprep.subr.bf16.mxu0 0
    %505 = vmatpush1.bf16.msra.mxu0 0
    %506 = vmatprep.subr.bf16.mxu0 0
    %507 = vmatpush1.bf16.msra.mxu0 0
    %508 = vmatprep.subr.bf16.mxu0 0
    %509 = vmatpush1.bf16.msra.mxu0 0
    %510 = vmatprep.subr.bf16.mxu0 0
    %511 = vmatpush1.bf16.msra.mxu0 0
    %512 = vmatprep.subr.bf16.mxu0 0
    %513 = vmatpush1.bf16.msra.mxu0 0
    %514 = vmatprep.subr.bf16.mxu0 0
    %515 = vmatpush1.bf16.msra.mxu0 0
    %516 = vmatprep.subr.bf16.mxu0 0
    %517 = vmatpush1.bf16.msra.mxu0 0
    %518 = vmatprep.subr.bf16.mxu0 0
    %519 = vmatpush1.bf16.msra.mxu0 0
    %520 = vmatprep.subr.bf16.mxu0 0
    %521 = vmatpush1.bf16.msra.mxu0 0
    %522 = vmatprep.mubr.bf16.mxu0 0
    %523 = vmatmul.mubr.bf16.gmra.mrb[0].mxu0 %v269
    %v524 = vpop.f32.mrb[0].mxu0
    %v525 = vadd.f32 0.0, %v524
    %v526 = vpop.f32.mrb[0].mxu0
    %v527 = vpop.f32.mrb[0].mxu0
    %v528 = vadd.f32 0.0, %v527
    %v529 = vpop.f32.mrb[0].mxu0
    %530 = vmatprep.mubr.bf16.mxu0 0
    %531 = vmatmul.mubr.bf16.gmra.mrb[0].mxu0 %v272
    %v532 = vpop.f32.mrb[0].mxu0
    %v533 = vadd.f32 0.0, %v532
    %v534 = vpop.f32.mrb[0].mxu0
    %v535 = vpop.f32.mrb[0].mxu0
    %v536 = vadd.f32 0.0, %v535
    %v537 = vpop.f32.mrb[0].mxu0
    %538 = vmatprep.mubr.bf16.mxu0 0
    %539 = vmatmul.mubr.bf16.gmra.mrb[0].mxu0 %v275
    %v540 = vpop.f32.mrb[0].mxu0
    %v541 = vadd.f32 0.0, %v540
    %v542 = vpop.f32.mrb[0].mxu0
    %v543 = vpop.f32.mrb[0].mxu0
    %v544 = vadd.f32 0.0, %v543
    %v545 = vpop.f32.mrb[0].mxu0
    %546 = vmatprep.mubr.bf16.mxu0 0
    %547 = vmatmul.mubr.bf16.gmra.mrb[0].mxu0 %v278
    %v548 = vpop.f32.mrb[0].mxu0
    %v549 = vadd.f32 0.0, %v548
    %v550 = vpop.f32.mrb[0].mxu0
    %v551 = vpop.f32.mrb[0].mxu0
    %v552 = vadd.f32 0.0, %v551
    %v553 = vpop.f32.mrb[0].mxu0
    %554 = vdwg.mxu0
    %555 = vst [vmem:[#allocation10] sm:$0xff] %v525
    %556 = vst [vmem:[#allocation10 + $0x8] sm:$0xff] %v528
    %557 = vst [vmem:[#allocation10 + $0x10] sm:$0xff] %v533
    %558 = vst [vmem:[#allocation10 + $0x18] sm:$0xff] %v536
    %559 = vst [vmem:[#allocation10 + $0x20] sm:$0xff] %v541
    %560 = vst [vmem:[#allocation10 + $0x28] sm:$0xff] %v544
    %561 = vst [vmem:[#allocation10 + $0x30] sm:$0xff] %v549
    %562 = vst [vmem:[#allocation10 + $0x38] sm:$0xff] %v552
    // Predicated region
    $region34: #{tpu_custom_call.1} parent=1 // pred_check
      _
    $region35: #{tpu_custom_call.1} parent=1 // pred_check_branch
      %564 = sbr.rel (0) target = $region37
    $region36: #{tpu_custom_call.1} parent=1 // pred_region
      %s566 = ssub.s32 1024, 1024
      %567 = vsyncadd [#allocation4], %s566
      %s568 = sshll.u32 [#allocation10], 4
      %s569 = int_to_ptr.vmem [resolvable:$true] %s568
      %574 = dma.vmem_to_hbm [thread:$0]  %s569, 1024, %s4, [#allocation4], 128, 128, 8
    $region37: #{tpu_custom_call.1} parent=1 // pred_fallthru
      _
    // Predicated region
    $region38: #{tpu_custom_call.1} parent=1 // pred_check
      _
    $region39: #{tpu_custom_call.1} parent=1 // pred_check_branch
      %576 = sbr.rel (0) target = $region41
    $region40: #{tpu_custom_call.1} parent=1 // pred_region
      %577 = dma.done [#allocation4], 1024
    $region41: #{tpu_custom_call.1} parent=1 // pred_fallthru
      _
    %578 = vsyncpa [#allocation3], 1
    %579 = vsyncpa [#allocation6], 1
    %580 = vsyncpa [#allocation9], 1
    %581 = vsyncpa [#allocation4], 1

</llo_original>
